<compile_context>
chip_gen: v6e
topology: v6e:2x2x1
jax: 0.10.0
libtpu: 0.0.40
codegen_flags: <defaults>
</compile_context>

<pallas_src>
import functools

import jax
import jax.numpy as jnp
from jax.experimental import pallas as pl
from jax.experimental.pallas import tpu as pltpu

IN_FEATURES = 8
HIDDEN = 32
N_TASKS = 2


def _round_up(x, m):
    return (x + m - 1) // m * m


def _mtl_kernel(x_ref,
                w1_ref, b1_ref,      # shared Linear(8,32)
                w2_ref, b2_ref,      # shared Linear(32,32)
                wt_ref, bt_ref,      # fused tower hidden Linear(32,64)
                wh_ref, bh_ref,      # fused (block-diagonal) heads Linear(64,2)
                y_ref):
    # x_ref: (IN_FEATURES, TB) feature-major tile; weights are (out, in); biases (out, 1).
    x = x_ref[...]

    # Shared trunk: Linear(8,32)+ReLU, Linear(32,32)+ReLU
    h = jnp.maximum(
        jnp.dot(w1_ref[...], x, preferred_element_type=jnp.float32) + b1_ref[...], 0.0)
    h = jnp.maximum(
        jnp.dot(w2_ref[...], h, preferred_element_type=jnp.float32) + b2_ref[...], 0.0)

    # Both tower hidden layers fused into one (64, 32) matmul + ReLU.
    t = jnp.maximum(
        jnp.dot(wt_ref[...], h, preferred_element_type=jnp.float32) + bt_ref[...], 0.0)

    # Both 1-wide heads fused into one block-diagonal (2, 64) matmul.
    y_ref[...] = (jnp.dot(wh_ref[...], t, preferred_element_type=jnp.float32)
                  + bh_ref[...])


def _full_spec(shape):
    # Grid-invariant (resident-in-VMEM) operand: same block every grid step.
    return pl.BlockSpec(shape, lambda i: (0, 0))


@functools.partial(jax.jit, static_argnames=("max_batch_tile",))
def mtl_forward_pallas(x, params, *, max_batch_tile=2048):
    """x: (B, 8) f32.  Returns (y1, y2), each (B, 1) f32."""
    B, in_f = x.shape
    assert in_f == IN_FEATURES

    # Lane-dense batch tile: multiple of 128, capped so double-buffered tiles stay far
    # below the v7x 64 MiB VMEM (a 2048-lane f32 x-tile is only 64 KiB).
    tb = min(max_batch_tile, _round_up(B, 128))
    b_pad = _round_up(B, tb)
    grid = (b_pad // tb,)

    # Feature-major activation layout: (IN_FEATURES, B_pad).
    x_pad = jnp.pad(x.astype(jnp.float32), ((0, b_pad - B), (0, 0)))
    xt = x_pad.T

    w1 = params["w1"].astype(jnp.float32)
    b1 = params["b1"].astype(jnp.float32).reshape(HIDDEN, 1)
    w2 = params["w2"].astype(jnp.float32)
    b2 = params["b2"].astype(jnp.float32).reshape(HIDDEN, 1)

    # Fuse the two towers' hidden layers: (2*HIDDEN, HIDDEN).
    wt = jnp.concatenate([params["w3a"], params["w3b"]], axis=0).astype(jnp.float32)
    bt = jnp.concatenate([params["b3a"], params["b3b"]], axis=0
                         ).astype(jnp.float32).reshape(2 * HIDDEN, 1)

    # Fuse the two 1-wide heads into a block-diagonal (2, 2*HIDDEN) weight so a single
    # matmul produces both task outputs as a lane-dense (2, TB) slab.
    zeros_h = jnp.zeros((1, HIDDEN), jnp.float32)
    wh = jnp.concatenate(
        [jnp.concatenate([params["w4a"].astype(jnp.float32), zeros_h], axis=1),
         jnp.concatenate([zeros_h, params["w4b"].astype(jnp.float32)], axis=1)],
        axis=0)                                                     # (2, 64)
    bh = jnp.concatenate([params["b4a"], params["b4b"]]
                         ).astype(jnp.float32).reshape(N_TASKS, 1)  # (2, 1)

    in_specs = [
        pl.BlockSpec((IN_FEATURES, tb), lambda i: (0, i)),   # streamed x tile
        _full_spec(w1.shape), _full_spec(b1.shape),
        _full_spec(w2.shape), _full_spec(b2.shape),
        _full_spec(wt.shape), _full_spec(bt.shape),
        _full_spec(wh.shape), _full_spec(bh.shape),
    ]
    out_specs = pl.BlockSpec((N_TASKS, tb), lambda i: (0, i))
    out_shape = jax.ShapeDtypeStruct((N_TASKS, b_pad), jnp.float32)

    y = pl.pallas_call(
        _mtl_kernel,
        grid=grid,
        in_specs=in_specs,
        out_specs=out_specs,
        out_shape=out_shape,
        compiler_params=pltpu.CompilerParams(
            dimension_semantics=("parallel",),
            vmem_limit_bytes=32 * 1024 * 1024,
        ),
    )(xt, w1, b1, w2, b2, wt, bt, wh, bh)

    y1 = y[0, :B].reshape(B, 1)
    y2 = y[1, :B].reshape(B, 1)
    return y1, y2


def mtl_model_forward(x, params):
    """Mirrors MTLModel.forward: returns ([tower1_out, tower2_out], losses, loss_weights).

    `losses` are the (unapplied) per-task loss functions, `loss_weights` the static
    weights, exactly like torchMTL returns MSELoss objects + [0.3, 0.7]."""
    y1, y2 = mtl_forward_pallas(x, params)
    mse = lambda pred, target: jnp.mean((pred - target) ** 2)
    losses = [mse, mse]
    loss_weights = [0.3, 0.7]
    return [y1, y2], losses, loss_weights


# ----------------------------- reference & setup -----------------------------

def _linear_init(key, out_f, in_f):
    # Match torch.nn.Linear default init: U(-1/sqrt(fan_in), 1/sqrt(fan_in)).
    kw, kb = jax.random.split(key)
    bound = 1.0 / (in_f ** 0.5)
    w = jax.random.uniform(kw, (out_f, in_f), jnp.float32, -bound, bound)
    b = jax.random.uniform(kb, (out_f,), jnp.float32, -bound, bound)
    return w, b


def make_params(key):
    keys = jax.random.split(key, 6)
    p = {}
    p["w1"], p["b1"] = _linear_init(keys[0], HIDDEN, IN_FEATURES)
    p["w2"], p["b2"] = _linear_init(keys[1], HIDDEN, HIDDEN)
    p["w3a"], p["b3a"] = _linear_init(keys[2], HIDDEN, HIDDEN)
    p["w4a"], p["b4a"] = _linear_init(keys[3], 1, HIDDEN)
    p["w3b"], p["b3b"] = _linear_init(keys[4], HIDDEN, HIDDEN)
    p["w4b"], p["b4b"] = _linear_init(keys[5], 1, HIDDEN)
    return p


def mtl_forward_reference(x, p):
    h = jax.nn.relu(x @ p["w1"].T + p["b1"])
    h = jax.nn.relu(h @ p["w2"].T + p["b2"])
    t1 = jax.nn.relu(h @ p["w3a"].T + p["b3a"])
    y1 = t1 @ p["w4a"].T + p["b4a"]
    t2 = jax.nn.relu(h @ p["w3b"].T + p["b3b"])
    y2 = t2 @ p["w4b"].T + p["b4b"]
    return y1, y2


if __name__ == "__main__":
    key = jax.random.PRNGKey(0)
    kx, kp = jax.random.split(key)

    batch = 256
    x = jax.random.normal(kx, (batch, IN_FEATURES), jnp.float32)
    params = make_params(kp)

    (y1, y2), losses, loss_weights = mtl_model_forward(x, params)
    y1, y2 = jax.block_until_ready((y1, y2))

    # Correctness check against a pure-JAX reference of the same network.
    r1, r2 = mtl_forward_reference(x, params)
    assert jnp.allclose(y1, r1, rtol=1e-5, atol=1e-5), "tower1 mismatch"
    assert jnp.allclose(y2, r2, rtol=1e-5, atol=1e-5), "tower2 mismatch"
    assert loss_weights == [0.3, 0.7]

    # Also check a batch that is not a multiple of the 128-lane tile (pad path).
    xb = jax.random.normal(jax.random.PRNGKey(1), (100, IN_FEATURES), jnp.float32)
    (p1, p2), _, _ = mtl_model_forward(xb, params)
    q1, q2 = mtl_forward_reference(xb, params)
    assert jnp.allclose(p1, q1, rtol=1e-5, atol=1e-5), "tower1 (padded) mismatch"
    assert jnp.allclose(p2, q2, rtol=1e-5, atol=1e-5), "tower2 (padded) mismatch"

    print("KERNEL_OK")
</pallas_src>

<mosaic_0001>
module attributes {stable_mosaic.version = 11 : i64} {
  func.func @_mtl_kernel(%arg0: i32, %arg1: memref<8x256xf32, #tpu.memory_space<vmem>>, %arg2: memref<32x8xf32, #tpu.memory_space<vmem>>, %arg3: memref<32x1xf32, #tpu.memory_space<vmem>>, %arg4: memref<32x32xf32, #tpu.memory_space<vmem>>, %arg5: memref<32x1xf32, #tpu.memory_space<vmem>>, %arg6: memref<64x32xf32, #tpu.memory_space<vmem>>, %arg7: memref<64x1xf32, #tpu.memory_space<vmem>>, %arg8: memref<2x64xf32, #tpu.memory_space<vmem>>, %arg9: memref<2x1xf32, #tpu.memory_space<vmem>>, %arg10: memref<2x256xf32, #tpu.memory_space<vmem>>) attributes {dimension_semantics = [#tpu.dimension_semantics<parallel>], iteration_bounds = array<i64: 1>, scalar_prefetch = 0 : i64, scratch_operands = 0 : i64, tpu.core_type = #tpu.core_type<tc>, window_params = [{transform_indices = @transform_0, window_bounds = array<i64: 8, 256>}, {pipeline_mode = #tpu.pipeline_mode<synchronous>, transform_indices = @transform_1, window_bounds = array<i64: 32, 8>}, {pipeline_mode = #tpu.pipeline_mode<synchronous>, transform_indices = @transform_2, window_bounds = array<i64: 32, 1>}, {pipeline_mode = #tpu.pipeline_mode<synchronous>, transform_indices = @transform_3, window_bounds = array<i64: 32, 32>}, {pipeline_mode = #tpu.pipeline_mode<synchronous>, transform_indices = @transform_4, window_bounds = array<i64: 32, 1>}, {pipeline_mode = #tpu.pipeline_mode<synchronous>, transform_indices = @transform_5, window_bounds = array<i64: 64, 32>}, {pipeline_mode = #tpu.pipeline_mode<synchronous>, transform_indices = @transform_6, window_bounds = array<i64: 64, 1>}, {pipeline_mode = #tpu.pipeline_mode<synchronous>, transform_indices = @transform_7, window_bounds = array<i64: 2, 64>}, {pipeline_mode = #tpu.pipeline_mode<synchronous>, transform_indices = @transform_8, window_bounds = array<i64: 2, 1>}, {transform_indices = @transform_9, window_bounds = array<i64: 2, 256>}]} {
    %c0 = arith.constant 0 : index
    %c0_0 = arith.constant 0 : index
    %0 = vector.load %arg1[%c0, %c0_0] : memref<8x256xf32, #tpu.memory_space<vmem>>, vector<8x256xf32>
    %c0_1 = arith.constant 0 : index
    %c0_2 = arith.constant 0 : index
    %1 = vector.load %arg2[%c0_1, %c0_2] : memref<32x8xf32, #tpu.memory_space<vmem>>, vector<32x8xf32>
    %cst = arith.constant dense<0.000000e+00> : vector<32x256xf32>
    %2 = tpu.matmul %1, %0, %cst {dimension_numbers = #tpu.dot_dimension_numbers<[1], [0], [0], [1], [0, 0, 1, 1], [], []>} : vector<32x8xf32>, vector<8x256xf32>, vector<32x256xf32> -> vector<32x256xf32>
    %c0_3 = arith.constant 0 : index
    %c0_4 = arith.constant 0 : index
    %3 = vector.load %arg3[%c0_3, %c0_4] : memref<32x1xf32, #tpu.memory_space<vmem>>, vector<32x1xf32>
    %4 = vector.broadcast %3 : vector<32x1xf32> to vector<32x256xf32>
    %5 = arith.addf %2, %4 : vector<32x256xf32>
    %cst_5 = arith.constant 0.000000e+00 : f32
    %6 = vector.broadcast %cst_5 : f32 to vector<32x256xf32>
    %7 = arith.maximumf %5, %6 : vector<32x256xf32>
    %c0_6 = arith.constant 0 : index
    %c0_7 = arith.constant 0 : index
    %8 = vector.load %arg4[%c0_6, %c0_7] : memref<32x32xf32, #tpu.memory_space<vmem>>, vector<32x32xf32>
    %cst_8 = arith.constant dense<0.000000e+00> : vector<32x256xf32>
    %9 = tpu.matmul %8, %7, %cst_8 {dimension_numbers = #tpu.dot_dimension_numbers<[1], [0], [0], [1], [0, 0, 1, 1], [], []>} : vector<32x32xf32>, vector<32x256xf32>, vector<32x256xf32> -> vector<32x256xf32>
    %c0_9 = arith.constant 0 : index
    %c0_10 = arith.constant 0 : index
    %10 = vector.load %arg5[%c0_9, %c0_10] : memref<32x1xf32, #tpu.memory_space<vmem>>, vector<32x1xf32>
    %11 = vector.broadcast %10 : vector<32x1xf32> to vector<32x256xf32>
    %12 = arith.addf %9, %11 : vector<32x256xf32>
    %cst_11 = arith.constant 0.000000e+00 : f32
    %13 = vector.broadcast %cst_11 : f32 to vector<32x256xf32>
    %14 = arith.maximumf %12, %13 : vector<32x256xf32>
    %c0_12 = arith.constant 0 : index
    %c0_13 = arith.constant 0 : index
    %15 = vector.load %arg6[%c0_12, %c0_13] : memref<64x32xf32, #tpu.memory_space<vmem>>, vector<64x32xf32>
    %cst_14 = arith.constant dense<0.000000e+00> : vector<64x256xf32>
    %16 = tpu.matmul %15, %14, %cst_14 {dimension_numbers = #tpu.dot_dimension_numbers<[1], [0], [0], [1], [0, 0, 1, 1], [], []>} : vector<64x32xf32>, vector<32x256xf32>, vector<64x256xf32> -> vector<64x256xf32>
    %c0_15 = arith.constant 0 : index
    %c0_16 = arith.constant 0 : index
    %17 = vector.load %arg7[%c0_15, %c0_16] : memref<64x1xf32, #tpu.memory_space<vmem>>, vector<64x1xf32>
    %18 = vector.broadcast %17 : vector<64x1xf32> to vector<64x256xf32>
    %19 = arith.addf %16, %18 : vector<64x256xf32>
    %cst_17 = arith.constant 0.000000e+00 : f32
    %20 = vector.broadcast %cst_17 : f32 to vector<64x256xf32>
    %21 = arith.maximumf %19, %20 : vector<64x256xf32>
    %c0_18 = arith.constant 0 : index
    %c0_19 = arith.constant 0 : index
    %22 = vector.load %arg8[%c0_18, %c0_19] : memref<2x64xf32, #tpu.memory_space<vmem>>, vector<2x64xf32>
    %cst_20 = arith.constant dense<0.000000e+00> : vector<2x256xf32>
    %23 = tpu.matmul %22, %21, %cst_20 {dimension_numbers = #tpu.dot_dimension_numbers<[1], [0], [0], [1], [0, 0, 1, 1], [], []>} : vector<2x64xf32>, vector<64x256xf32>, vector<2x256xf32> -> vector<2x256xf32>
    %c0_21 = arith.constant 0 : index
    %c0_22 = arith.constant 0 : index
    %24 = vector.load %arg9[%c0_21, %c0_22] : memref<2x1xf32, #tpu.memory_space<vmem>>, vector<2x1xf32>
    %25 = vector.broadcast %24 : vector<2x1xf32> to vector<2x256xf32>
    %26 = arith.addf %23, %25 : vector<2x256xf32>
    %c0_23 = arith.constant 0 : index
    %c0_24 = arith.constant 0 : index
    %27 = vector.load %arg10[%c0_23, %c0_24] : memref<2x256xf32, #tpu.memory_space<vmem>>, vector<2x256xf32>
    tpu.vector_store %arg10[%c0_23, %c0_24], %26 {strides = array<i32>} : memref<2x256xf32, #tpu.memory_space<vmem>>, vector<2x256xf32>,
    return
  }
  func.func @transform_0(%arg0: i32) -> (i32, i32) {
    %c0_i32 = arith.constant 0 : i32
    %c0_i32_0 = arith.constant 0 : i32
    return %c0_i32, %arg0 : i32, i32
  }
  func.func @transform_1(%arg0: i32) -> (i32, i32) {
    %c0_i32 = arith.constant 0 : i32
    %c0_i32_0 = arith.constant 0 : i32
    %c0_i32_1 = arith.constant 0 : i32
    return %c0_i32, %c0_i32_0 : i32, i32
  }
  func.func @transform_2(%arg0: i32) -> (i32, i32) {
    %c0_i32 = arith.constant 0 : i32
    %c0_i32_0 = arith.constant 0 : i32
    %c0_i32_1 = arith.constant 0 : i32
    return %c0_i32, %c0_i32_0 : i32, i32
  }
  func.func @transform_3(%arg0: i32) -> (i32, i32) {
    %c0_i32 = arith.constant 0 : i32
    %c0_i32_0 = arith.constant 0 : i32
    %c0_i32_1 = arith.constant 0 : i32
    return %c0_i32, %c0_i32_0 : i32, i32
  }
  func.func @transform_4(%arg0: i32) -> (i32, i32) {
    %c0_i32 = arith.constant 0 : i32
    %c0_i32_0 = arith.constant 0 : i32
    %c0_i32_1 = arith.constant 0 : i32
    return %c0_i32, %c0_i32_0 : i32, i32
  }
  func.func @transform_5(%arg0: i32) -> (i32, i32) {
    %c0_i32 = arith.constant 0 : i32
    %c0_i32_0 = arith.constant 0 : i32
    %c0_i32_1 = arith.constant 0 : i32
    return %c0_i32, %c0_i32_0 : i32, i32
  }
  func.func @transform_6(%arg0: i32) -> (i32, i32) {
    %c0_i32 = arith.constant 0 : i32
    %c0_i32_0 = arith.constant 0 : i32
    %c0_i32_1 = arith.constant 0 : i32
    return %c0_i32, %c0_i32_0 : i32, i32
  }
  func.func @transform_7(%arg0: i32) -> (i32, i32) {
    %c0_i32 = arith.constant 0 : i32
    %c0_i32_0 = arith.constant 0 : i32
    %c0_i32_1 = arith.constant 0 : i32
    return %c0_i32, %c0_i32_0 : i32, i32
  }
  func.func @transform_8(%arg0: i32) -> (i32, i32) {
    %c0_i32 = arith.constant 0 : i32
    %c0_i32_0 = arith.constant 0 : i32
    %c0_i32_1 = arith.constant 0 : i32
    return %c0_i32, %c0_i32_0 : i32, i32
  }
  func.func @transform_9(%arg0: i32) -> (i32, i32) {
    %c0_i32 = arith.constant 0 : i32
    %c0_i32_0 = arith.constant 0 : i32
    return %c0_i32, %arg0 : i32, i32
  }
}

</mosaic_0001>

<llo_original>
// kernel: mtl_forward_pallas.1
$region0: #{mtl_forward_pallas.1}
  #allocation0 [shape = 'u32[]', space=smem, size = 0x4, offset = 0x4, fixed_abs, tag = 'smem constant byte address 0x4 - core index']
  #allocation1 [shape = 'u32[144,128]{1,0:T(1,128)}', space=vmem, size = 0x12000, scoped, tag = 'internal scratch']
  %s0 = inlined_call_operand.vmem [shape: f32[8,256], index: 0, kind: input, shape index: {}]
  %s1 = inlined_call_operand.vmem [shape: f32[32,8], index: 1, kind: input, shape index: {}]
  %s2 = inlined_call_operand.vmem [shape: f32[32,1], index: 2, kind: input, shape index: {}]
  %s3 = inlined_call_operand.vmem [shape: f32[32,32], index: 3, kind: input, shape index: {}]
  %s4 = inlined_call_operand.vmem [shape: f32[32,1], index: 4, kind: input, shape index: {}]
  %s5 = inlined_call_operand.vmem [shape: f32[64,32], index: 5, kind: input, shape index: {}]
  %s6 = inlined_call_operand.vmem [shape: f32[64,1], index: 6, kind: input, shape index: {}]
  %s7 = inlined_call_operand.vmem [shape: f32[2,64], index: 7, kind: input, shape index: {}]
  %s8 = inlined_call_operand.vmem [shape: f32[2,1], index: 8, kind: input, shape index: {}]
  %s9 = inlined_call_operand.vmem [shape: f32[2,256], index: 9, kind: output, shape index: {}]
  %s10 = sld [smem:[#allocation0]]
  $region46: #{mtl_forward_pallas.1} parent=0
    _
  %s12 = ssub.s32 1, %s10
  %s13 = scalar_select 0, %s12, %s10
  // Predicated region
  $region2: #{mtl_forward_pallas.1} parent=0 // pred_check
    _
  $region3: #{mtl_forward_pallas.1} parent=0 // pred_check_branch
    %15 = sbr.rel (0) target = $region5
  $region4: #{mtl_forward_pallas.1} parent=0 // pred_region
    _
  $region5: #{mtl_forward_pallas.1} parent=0 // pred_fallthru
    _
  // Predicated region
  $region6: #{mtl_forward_pallas.1} parent=0 // pred_check
    _
  $region7: #{mtl_forward_pallas.1} parent=0 // pred_check_branch
    %17 = sbr.rel (0) target = $region9
  $region8: #{mtl_forward_pallas.1} parent=0 // pred_region
    _
  $region9: #{mtl_forward_pallas.1} parent=0 // pred_fallthru
    _
  // Predicated region
  $region10: #{mtl_forward_pallas.1} parent=0 // pred_check
    _
  $region11: #{mtl_forward_pallas.1} parent=0 // pred_check_branch
    %19 = sbr.rel (0) target = $region13
  $region12: #{mtl_forward_pallas.1} parent=0 // pred_region
    _
  $region13: #{mtl_forward_pallas.1} parent=0 // pred_fallthru
    _
  // Predicated region
  $region14: #{mtl_forward_pallas.1} parent=0 // pred_check
    _
  $region15: #{mtl_forward_pallas.1} parent=0 // pred_check_branch
    %21 = sbr.rel (0) target = $region17
  $region16: #{mtl_forward_pallas.1} parent=0 // pred_region
    _
  $region17: #{mtl_forward_pallas.1} parent=0 // pred_fallthru
    _
  // Predicated region
  $region18: #{mtl_forward_pallas.1} parent=0 // pred_check
    _
  $region19: #{mtl_forward_pallas.1} parent=0 // pred_check_branch
    %23 = sbr.rel (0) target = $region21
  $region20: #{mtl_forward_pallas.1} parent=0 // pred_region
    _
  $region21: #{mtl_forward_pallas.1} parent=0 // pred_fallthru
    _
  // Predicated region
  $region22: #{mtl_forward_pallas.1} parent=0 // pred_check
    _
  $region23: #{mtl_forward_pallas.1} parent=0 // pred_check_branch
    %25 = sbr.rel (0) target = $region25
  $region24: #{mtl_forward_pallas.1} parent=0 // pred_region
    _
  $region25: #{mtl_forward_pallas.1} parent=0 // pred_fallthru
    _
  // Predicated region
  $region26: #{mtl_forward_pallas.1} parent=0 // pred_check
    _
  $region27: #{mtl_forward_pallas.1} parent=0 // pred_check_branch
    %27 = sbr.rel (0) target = $region29
  $region28: #{mtl_forward_pallas.1} parent=0 // pred_region
    _
  $region29: #{mtl_forward_pallas.1} parent=0 // pred_fallthru
    _
  // Predicated region
  $region30: #{mtl_forward_pallas.1} parent=0 // pred_check
    _
  $region31: #{mtl_forward_pallas.1} parent=0 // pred_check_branch
    %29 = sbr.rel (0) target = $region33
  $region32: #{mtl_forward_pallas.1} parent=0 // pred_region
    _
  $region33: #{mtl_forward_pallas.1} parent=0 // pred_fallthru
    _
  // Predicated region
  $region34: #{mtl_forward_pallas.1} parent=0 // pred_check
    _
  $region35: #{mtl_forward_pallas.1} parent=0 // pred_check_branch
    %31 = sbr.rel (0) target = $region37
  $region36: #{mtl_forward_pallas.1} parent=0 // pred_region
    _
  $region37: #{mtl_forward_pallas.1} parent=0 // pred_fallthru
    _
  %v32 = vld [vmem:[%s0] sm:$0xff]
  %v33 = vld [vmem:[%s0 + $0x8] sm:$0xff]
  %v34 = vld [vmem:[%s1] sm:$0xff]
  %v35 = vld [vmem:[%s1 + $0x8] sm:$0xff]
  %v36 = vld [vmem:[%s1 + $0x10] sm:$0xff]
  %v37 = vld [vmem:[%s1 + $0x18] sm:$0xff]
  %v38 = vld [vmem:[%s2] sm:$0xff]
  %v39 = vld [vmem:[%s2 + $0x8] sm:$0xff]
  %v40 = vld [vmem:[%s2 + $0x10] sm:$0xff]
  %v41 = vld [vmem:[%s2 + $0x18] sm:$0xff]
  %43 = vset.pattern.permute.xlu0 0
  %44 = vperm.xlu0 %43, %v38
  %v45 = vpop.permute.xlu0 %44
  %48 = vset.pattern.permute.xlu0 0
  %49 = vperm.xlu0 %48, %v39
  %v50 = vpop.permute.xlu0 %49
  %53 = vset.pattern.permute.xlu0 0
  %54 = vperm.xlu0 %53, %v40
  %v55 = vpop.permute.xlu0 %54
  %58 = vset.pattern.permute.xlu0 0
  %59 = vperm.xlu0 %58, %v41
  %v60 = vpop.permute.xlu0 %59
  %vm62 = vcmask 64512
  %v64 = vsel %vm62, %v34, 0
  %v67 = vsel %vm62, %v35, 0
  %v70 = vsel %vm62, %v36, 0
  %v73 = vsel %vm62, %v37, 0
  %75 = vmatprep.subr.mxu0 0.0
  %76 = vmatpush1.msra.mxu0 0.0
  %77 = vmatprep.subr.mxu0 0.0
  %78 = vmatpush1.msra.mxu0 0.0
  %79 = vmatprep.subr.mxu0 0.0
  %80 = vmatpush1.msra.mxu0 0.0
  %81 = vmatprep.subr.mxu0 0.0
  %82 = vmatpush1.msra.mxu0 0.0
  %83 = vmatprep.subr.mxu0 0.0
  %84 = vmatpush1.msra.mxu0 0.0
  %85 = vmatprep.subr.mxu0 0.0
  %86 = vmatpush1.msra.mxu0 0.0
  %87 = vmatprep.subr.mxu0 0.0
  %88 = vmatpush1.msra.mxu0 0.0
  %89 = vmatprep.subr.mxu0 0.0
  %90 = vmatpush1.msra.mxu0 0.0
  %91 = vmatprep.subr.mxu0 0.0
  %92 = vmatpush1.msra.mxu0 0.0
  %93 = vmatprep.subr.mxu0 0.0
  %94 = vmatpush1.msra.mxu0 0.0
  %95 = vmatprep.subr.mxu0 0.0
  %96 = vmatpush1.msra.mxu0 0.0
  %97 = vmatprep.subr.mxu0 0.0
  %98 = vmatpush1.msra.mxu0 0.0
  %99 = vmatprep.subr.mxu0 0.0
  %100 = vmatpush1.msra.mxu0 0.0
  %101 = vmatprep.subr.mxu0 0.0
  %102 = vmatpush1.msra.mxu0 0.0
  %103 = vmatprep.subr.mxu0 0.0
  %104 = vmatpush1.msra.mxu0 0.0
  %105 = vmatprep.subr.mxu0 %v33
  %106 = vmatpush1.msra.mxu0 %v32
  %107 = vmatprep.subr.mxu0 0.0
  %108 = vmatpush2.msra.mxu0 0.0
  %109 = vmatprep.subr.mxu0 0.0
  %110 = vmatpush2.msra.mxu0 0.0
  %111 = vmatprep.subr.mxu0 0.0
  %112 = vmatpush2.msra.mxu0 0.0
  %113 = vmatprep.subr.mxu0 0.0
  %114 = vmatpush2.msra.mxu0 0.0
  %115 = vmatprep.subr.mxu0 0.0
  %116 = vmatpush2.msra.mxu0 0.0
  %117 = vmatprep.subr.mxu0 0.0
  %118 = vmatpush2.msra.mxu0 0.0
  %119 = vmatprep.subr.mxu0 0.0
  %120 = vmatpush2.msra.mxu0 0.0
  %121 = vmatprep.subr.mxu0 0.0
  %122 = vmatpush2.msra.mxu0 0.0
  %123 = vmatprep.subr.mxu0 0.0
  %124 = vmatpush2.msra.mxu0 0.0
  %125 = vmatprep.subr.mxu0 0.0
  %126 = vmatpush2.msra.mxu0 0.0
  %127 = vmatprep.subr.mxu0 0.0
  %128 = vmatpush2.msra.mxu0 0.0
  %129 = vmatprep.subr.mxu0 0.0
  %130 = vmatpush2.msra.mxu0 0.0
  %131 = vmatprep.subr.mxu0 0.0
  %132 = vmatpush2.msra.mxu0 0.0
  %133 = vmatprep.subr.mxu0 0.0
  %134 = vmatpush2.msra.mxu0 0.0
  %135 = vmatprep.subr.mxu0 0.0
  %136 = vmatpush2.msra.mxu0 0.0
  %137 = vmatprep.subr.mxu0 0.0
  %138 = vmatpush2.msra.mxu0 0.0
  %139 = vmatprep.mubr.f32.mxu0 0.0
  %140 = vmatmul.mubr.f32.gmra.mxu0 %v64
  %v141 = vpop.f32.mrf.mxu0
  %v142 = vadd.f32 %v45, %v141
  %v143 = vpop.f32.mrf.mxu0
  %v144 = vadd.f32 %v45, %v143
  %145 = vmatprep.mubr.f32.mxu0 0.0
  %146 = vmatmul.mubr.f32.gmra.mxu0 %v67
  %v147 = vpop.f32.mrf.mxu0
  %v148 = vadd.f32 %v50, %v147
  %v149 = vpop.f32.mrf.mxu0
  %v150 = vadd.f32 %v50, %v149
  %151 = vmatprep.mubr.f32.mxu0 0.0
  %152 = vmatmul.mubr.f32.gmra.mxu0 %v70
  %v153 = vpop.f32.mrf.mxu0
  %v154 = vadd.f32 %v55, %v153
  %v155 = vpop.f32.mrf.mxu0
  %v156 = vadd.f32 %v55, %v155
  %157 = vmatprep.mubr.f32.mxu0 0.0
  %158 = vmatmul.mubr.f32.gmra.mxu0 %v73
  %v159 = vpop.f32.mrf.mxu0
  %v160 = vadd.f32 %v60, %v159
  %v161 = vpop.f32.mrf.mxu0
  %v162 = vadd.f32 %v60, %v161
  %163 = vdwg.mxu0
  %v164 = vmax.f32 %v142, 0.0
  %v165 = vmax.f32 %v144, 0.0
  %v166 = vmax.f32 %v148, 0.0
  %v167 = vmax.f32 %v150, 0.0
  %v168 = vmax.f32 %v154, 0.0
  %v169 = vmax.f32 %v156, 0.0
  %v170 = vmax.f32 %v160, 0.0
  %v171 = vmax.f32 %v162, 0.0
  %v172 = vld [vmem:[%s3] sm:$0xff]
  %v173 = vld [vmem:[%s3 + $0x8] sm:$0xff]
  %v174 = vld [vmem:[%s3 + $0x10] sm:$0xff]
  %v175 = vld [vmem:[%s3 + $0x18] sm:$0xff]
  %v176 = vld [vmem:[%s4] sm:$0xff]
  %v177 = vld [vmem:[%s4 + $0x8] sm:$0xff]
  %v178 = vld [vmem:[%s4 + $0x10] sm:$0xff]
  %v179 = vld [vmem:[%s4 + $0x18] sm:$0xff]
  %181 = vset.pattern.permute.xlu0 0
  %182 = vperm.xlu0 %181, %v176
  %v183 = vpop.permute.xlu0 %182
  %186 = vset.pattern.permute.xlu0 0
  %187 = vperm.xlu0 %186, %v177
  %v188 = vpop.permute.xlu0 %187
  %191 = vset.pattern.permute.xlu0 0
  %192 = vperm.xlu0 %191, %v178
  %v193 = vpop.permute.xlu0 %192
  %196 = vset.pattern.permute.xlu0 0
  %197 = vperm.xlu0 %196, %v179
  %v198 = vpop.permute.xlu0 %197
  %vm200 = vcmask 261120
  %v202 = vsel %vm200, %v172, 0
  %v205 = vsel %vm200, %v173, 0
  %v208 = vsel %vm200, %v174, 0
  %v211 = vsel %vm200, %v175, 0
  %213 = vmatprep.subr.mxu0 0.0
  %214 = vmatpush1.msra.mxu0 0.0
  %215 = vmatprep.subr.mxu0 0.0
  %216 = vmatpush1.msra.mxu0 0.0
  %217 = vmatprep.subr.mxu0 0.0
  %218 = vmatpush1.msra.mxu0 0.0
  %219 = vmatprep.subr.mxu0 0.0
  %220 = vmatpush1.msra.mxu0 0.0
  %221 = vmatprep.subr.mxu0 0.0
  %222 = vmatpush1.msra.mxu0 0.0
  %223 = vmatprep.subr.mxu0 0.0
  %224 = vmatpush1.msra.mxu0 0.0
  %225 = vmatprep.subr.mxu0 0.0
  %226 = vmatpush1.msra.mxu0 0.0
  %227 = vmatprep.subr.mxu0 0.0
  %228 = vmatpush1.msra.mxu0 0.0
  %229 = vmatprep.subr.mxu0 0.0
  %230 = vmatpush1.msra.mxu0 0.0
  %231 = vmatprep.subr.mxu0 0.0
  %232 = vmatpush1.msra.mxu0 0.0
  %233 = vmatprep.subr.mxu0 0.0
  %234 = vmatpush1.msra.mxu0 0.0
  %235 = vmatprep.subr.mxu0 0.0
  %236 = vmatpush1.msra.mxu0 0.0
  %237 = vmatprep.subr.mxu0 %v171
  %238 = vmatpush1.msra.mxu0 %v170
  %239 = vmatprep.subr.mxu0 %v169
  %240 = vmatpush1.msra.mxu0 %v168
  %241 = vmatprep.subr.mxu0 %v167
  %242 = vmatpush1.msra.mxu0 %v166
  %243 = vmatprep.subr.mxu0 %v165
  %244 = vmatpush1.msra.mxu0 %v164
  %245 = vmatprep.subr.mxu0 0.0
  %246 = vmatpush2.msra.mxu0 0.0
  %247 = vmatprep.subr.mxu0 0.0
  %248 = vmatpush2.msra.mxu0 0.0
  %249 = vmatprep.subr.mxu0 0.0
  %250 = vmatpush2.msra.mxu0 0.0
  %251 = vmatprep.subr.mxu0 0.0
  %252 = vmatpush2.msra.mxu0 0.0
  %253 = vmatprep.subr.mxu0 0.0
  %254 = vmatpush2.msra.mxu0 0.0
  %255 = vmatprep.subr.mxu0 0.0
  %256 = vmatpush2.msra.mxu0 0.0
  %257 = vmatprep.subr.mxu0 0.0
  %258 = vmatpush2.msra.mxu0 0.0
  %259 = vmatprep.subr.mxu0 0.0
  %260 = vmatpush2.msra.mxu0 0.0
  %261 = vmatprep.subr.mxu0 0.0
  %262 = vmatpush2.msra.mxu0 0.0
  %263 = vmatprep.subr.mxu0 0.0
  %264 = vmatpush2.msra.mxu0 0.0
  %265 = vmatprep.subr.mxu0 0.0
  %266 = vmatpush2.msra.mxu0 0.0
  %267 = vmatprep.subr.mxu0 0.0
  %268 = vmatpush2.msra.mxu0 0.0
  %269 = vmatprep.subr.mxu0 0.0
  %270 = vmatpush2.msra.mxu0 0.0
  %271 = vmatprep.subr.mxu0 0.0
  %272 = vmatpush2.msra.mxu0 0.0
  %273 = vmatprep.subr.mxu0 0.0
  %274 = vmatpush2.msra.mxu0 0.0
  %275 = vmatprep.subr.mxu0 0.0
  %276 = vmatpush2.msra.mxu0 0.0
  %277 = vmatprep.mubr.f32.mxu0 0.0
  %278 = vmatmul.mubr.f32.gmra.mxu0 %v202
  %v279 = vpop.f32.mrf.mxu0
  %v280 = vadd.f32 %v183, %v279
  %v281 = vpop.f32.mrf.mxu0
  %v282 = vadd.f32 %v183, %v281
  %283 = vmatprep.mubr.f32.mxu0 0.0
  %284 = vmatmul.mubr.f32.gmra.mxu0 %v205
  %v285 = vpop.f32.mrf.mxu0
  %v286 = vadd.f32 %v188, %v285
  %v287 = vpop.f32.mrf.mxu0
  %v288 = vadd.f32 %v188, %v287
  %289 = vmatprep.mubr.f32.mxu0 0.0
  %290 = vmatmul.mubr.f32.gmra.mxu0 %v208
  %v291 = vpop.f32.mrf.mxu0
  %v292 = vadd.f32 %v193, %v291
  %v293 = vpop.f32.mrf.mxu0
  %v294 = vadd.f32 %v193, %v293
  %295 = vmatprep.mubr.f32.mxu0 0.0
  %296 = vmatmul.mubr.f32.gmra.mxu0 %v211
  %v297 = vpop.f32.mrf.mxu0
  %v298 = vadd.f32 %v198, %v297
  %v299 = vpop.f32.mrf.mxu0
  %v300 = vadd.f32 %v198, %v299
  %301 = vdwg.mxu0
  %v302 = vmax.f32 %v280, 0.0
  %v303 = vmax.f32 %v282, 0.0
  %v304 = vmax.f32 %v286, 0.0
  %v305 = vmax.f32 %v288, 0.0
  %v306 = vmax.f32 %v292, 0.0
  %v307 = vmax.f32 %v294, 0.0
  %v308 = vmax.f32 %v298, 0.0
  %v309 = vmax.f32 %v300, 0.0
  %v310 = vld [vmem:[%s5] sm:$0xff]
  %v311 = vld [vmem:[%s5 + $0x8] sm:$0xff]
  %v312 = vld [vmem:[%s5 + $0x10] sm:$0xff]
  %v313 = vld [vmem:[%s5 + $0x18] sm:$0xff]
  %v314 = vld [vmem:[%s5 + $0x20] sm:$0xff]
  %v315 = vld [vmem:[%s5 + $0x28] sm:$0xff]
  %v316 = vld [vmem:[%s5 + $0x30] sm:$0xff]
  %v317 = vld [vmem:[%s5 + $0x38] sm:$0xff]
  %v318 = vld [vmem:[%s6] sm:$0xff]
  %v319 = vld [vmem:[%s6 + $0x8] sm:$0xff]
  %v320 = vld [vmem:[%s6 + $0x10] sm:$0xff]
  %v321 = vld [vmem:[%s6 + $0x18] sm:$0xff]
  %v322 = vld [vmem:[%s6 + $0x20] sm:$0xff]
  %v323 = vld [vmem:[%s6 + $0x28] sm:$0xff]
  %v324 = vld [vmem:[%s6 + $0x30] sm:$0xff]
  %v325 = vld [vmem:[%s6 + $0x38] sm:$0xff]
  %327 = vset.pattern.permute.xlu0 0
  %328 = vperm.xlu0 %327, %v318
  %v329 = vpop.permute.xlu0 %328
  %332 = vset.pattern.permute.xlu0 0
  %333 = vperm.xlu0 %332, %v319
  %v334 = vpop.permute.xlu0 %333
  %337 = vset.pattern.permute.xlu0 0
  %338 = vperm.xlu0 %337, %v320
  %v339 = vpop.permute.xlu0 %338
  %342 = vset.pattern.permute.xlu0 0
  %343 = vperm.xlu0 %342, %v321
  %v344 = vpop.permute.xlu0 %343
  %347 = vset.pattern.permute.xlu0 0
  %348 = vperm.xlu0 %347, %v322
  %v349 = vpop.permute.xlu0 %348
  %352 = vset.pattern.permute.xlu0 0
  %353 = vperm.xlu0 %352, %v323
  %v354 = vpop.permute.xlu0 %353
  %357 = vset.pattern.permute.xlu0 0
  %358 = vperm.xlu0 %357, %v324
  %v359 = vpop.permute.xlu0 %358
  %362 = vset.pattern.permute.xlu0 0
  %363 = vperm.xlu0 %362, %v325
  %v364 = vpop.permute.xlu0 %363
  %v367 = vsel %vm200, %v310, 0
  %v370 = vsel %vm200, %v311, 0
  %v373 = vsel %vm200, %v312, 0
  %v376 = vsel %vm200, %v313, 0
  %v379 = vsel %vm200, %v314, 0
  %v382 = vsel %vm200, %v315, 0
  %v385 = vsel %vm200, %v316, 0
  %v388 = vsel %vm200, %v317, 0
  %390 = vmatprep.subr.mxu0 0.0
  %391 = vmatpush1.msra.mxu0 0.0
  %392 = vmatprep.subr.mxu0 0.0
  %393 = vmatpush1.msra.mxu0 0.0
  %394 = vmatprep.subr.mxu0 0.0
  %395 = vmatpush1.msra.mxu0 0.0
  %396 = vmatprep.subr.mxu0 0.0
  %397 = vmatpush1.msra.mxu0 0.0
  %398 = vmatprep.subr.mxu0 0.0
  %399 = vmatpush1.msra.mxu0 0.0
  %400 = vmatprep.subr.mxu0 0.0
  %401 = vmatpush1.msra.mxu0 0.0
  %402 = vmatprep.subr.mxu0 0.0
  %403 = vmatpush1.msra.mxu0 0.0
  %404 = vmatprep.subr.mxu0 0.0
  %405 = vmatpush1.msra.mxu0 0.0
  %406 = vmatprep.subr.mxu0 0.0
  %407 = vmatpush1.msra.mxu0 0.0
  %408 = vmatprep.subr.mxu0 0.0
  %409 = vmatpush1.msra.mxu0 0.0
  %410 = vmatprep.subr.mxu0 0.0
  %411 = vmatpush1.msra.mxu0 0.0
  %412 = vmatprep.subr.mxu0 0.0
  %413 = vmatpush1.msra.mxu0 0.0
  %414 = vmatprep.subr.mxu0 %v309
  %415 = vmatpush1.msra.mxu0 %v308
  %416 = vmatprep.subr.mxu0 %v307
  %417 = vmatpush1.msra.mxu0 %v306
  %418 = vmatprep.subr.mxu0 %v305
  %419 = vmatpush1.msra.mxu0 %v304
  %420 = vmatprep.subr.mxu0 %v303
  %421 = vmatpush1.msra.mxu0 %v302
  %422 = vmatprep.subr.mxu0 0.0
  %423 = vmatpush2.msra.mxu0 0.0
  %424 = vmatprep.subr.mxu0 0.0
  %425 = vmatpush2.msra.mxu0 0.0
  %426 = vmatprep.subr.mxu0 0.0
  %427 = vmatpush2.msra.mxu0 0.0
  %428 = vmatprep.subr.mxu0 0.0
  %429 = vmatpush2.msra.mxu0 0.0
  %430 = vmatprep.subr.mxu0 0.0
  %431 = vmatpush2.msra.mxu0 0.0
  %432 = vmatprep.subr.mxu0 0.0
  %433 = vmatpush2.msra.mxu0 0.0
  %434 = vmatprep.subr.mxu0 0.0
  %435 = vmatpush2.msra.mxu0 0.0
  %436 = vmatprep.subr.mxu0 0.0
  %437 = vmatpush2.msra.mxu0 0.0
  %438 = vmatprep.subr.mxu0 0.0
  %439 = vmatpush2.msra.mxu0 0.0
  %440 = vmatprep.subr.mxu0 0.0
  %441 = vmatpush2.msra.mxu0 0.0
  %442 = vmatprep.subr.mxu0 0.0
  %443 = vmatpush2.msra.mxu0 0.0
  %444 = vmatprep.subr.mxu0 0.0
  %445 = vmatpush2.msra.mxu0 0.0
  %446 = vmatprep.subr.mxu0 0.0
  %447 = vmatpush2.msra.mxu0 0.0
  %448 = vmatprep.subr.mxu0 0.0
  %449 = vmatpush2.msra.mxu0 0.0
  %450 = vmatprep.subr.mxu0 0.0
  %451 = vmatpush2.msra.mxu0 0.0
  %452 = vmatprep.subr.mxu0 0.0
  %453 = vmatpush2.msra.mxu0 0.0
  %454 = vmatprep.mubr.f32.mxu0 0.0
  %455 = vmatmul.mubr.f32.gmra.mxu0 %v367
  %v456 = vpop.f32.mrf.mxu0
  %v457 = vadd.f32 %v329, %v456
  %v458 = vpop.f32.mrf.mxu0
  %v459 = vadd.f32 %v329, %v458
  %460 = vmatprep.mubr.f32.mxu0 0.0
  %461 = vmatmul.mubr.f32.gmra.mxu0 %v370
  %v462 = vpop.f32.mrf.mxu0
  %v463 = vadd.f32 %v334, %v462
  %v464 = vpop.f32.mrf.mxu0
  %v465 = vadd.f32 %v334, %v464
  %466 = vmatprep.mubr.f32.mxu0 0.0
  %467 = vmatmul.mubr.f32.gmra.mxu0 %v373
  %v468 = vpop.f32.mrf.mxu0
  %v469 = vadd.f32 %v339, %v468
  %v470 = vpop.f32.mrf.mxu0
  %v471 = vadd.f32 %v339, %v470
  %472 = vmatprep.mubr.f32.mxu0 0.0
  %473 = vmatmul.mubr.f32.gmra.mxu0 %v376
  %v474 = vpop.f32.mrf.mxu0
  %v475 = vadd.f32 %v344, %v474
  %v476 = vpop.f32.mrf.mxu0
  %v477 = vadd.f32 %v344, %v476
  %478 = vmatprep.mubr.f32.mxu0 0.0
  %479 = vmatmul.mubr.f32.gmra.mxu0 %v379
  %v480 = vpop.f32.mrf.mxu0
  %v481 = vadd.f32 %v349, %v480
  %v482 = vpop.f32.mrf.mxu0
  %v483 = vadd.f32 %v349, %v482
  %484 = vmatprep.mubr.f32.mxu0 0.0
  %485 = vmatmul.mubr.f32.gmra.mxu0 %v382
  %v486 = vpop.f32.mrf.mxu0
  %v487 = vadd.f32 %v354, %v486
  %v488 = vpop.f32.mrf.mxu0
  %v489 = vadd.f32 %v354, %v488
  %490 = vmatprep.mubr.f32.mxu0 0.0
  %491 = vmatmul.mubr.f32.gmra.mxu0 %v385
  %v492 = vpop.f32.mrf.mxu0
  %v493 = vadd.f32 %v359, %v492
  %v494 = vpop.f32.mrf.mxu0
  %v495 = vadd.f32 %v359, %v494
  %496 = vmatprep.mubr.f32.mxu0 0.0
  %497 = vmatmul.mubr.f32.gmra.mxu0 %v388
  %v498 = vpop.f32.mrf.mxu0
  %v499 = vadd.f32 %v364, %v498
  %v500 = vpop.f32.mrf.mxu0
  %v501 = vadd.f32 %v364, %v500
  %502 = vdwg.mxu0
  %v503 = vmax.f32 %v457, 0.0
  %v504 = vmax.f32 %v459, 0.0
  %v505 = vmax.f32 %v463, 0.0
  %v506 = vmax.f32 %v465, 0.0
  %v507 = vmax.f32 %v469, 0.0
  %v508 = vmax.f32 %v471, 0.0
  %v509 = vmax.f32 %v475, 0.0
  %v510 = vmax.f32 %v477, 0.0
  %v511 = vmax.f32 %v481, 0.0
  %v512 = vmax.f32 %v483, 0.0
  %v513 = vmax.f32 %v487, 0.0
  %v514 = vmax.f32 %v489, 0.0
  %v515 = vmax.f32 %v493, 0.0
  %v516 = vmax.f32 %v495, 0.0
  %v517 = vmax.f32 %v499, 0.0
  %v518 = vmax.f32 %v501, 0.0
  %v519 = vld [vmem:[%s7] sm:$0x3]
  %v520 = vld [vmem:[%s8] sm:$0x3]
  %522 = vset.pattern.permute.xlu0 0
  %523 = vperm.xlu0 %522, %v520
  %v524 = vpop.permute.xlu0 %523
  %vm526 = vcmask 523264
  %v528 = vsel %vm526, %v519, 0
  %530 = vmatprep.subr.mxu0 0.0
  %531 = vmatpush1.msra.mxu0 0.0
  %532 = vmatprep.subr.mxu0 0.0
  %533 = vmatpush1.msra.mxu0 0.0
  %534 = vmatprep.subr.mxu0 0.0
  %535 = vmatpush1.msra.mxu0 0.0
  %536 = vmatprep.subr.mxu0 0.0
  %537 = vmatpush1.msra.mxu0 0.0
  %538 = vmatprep.subr.mxu0 0.0
  %539 = vmatpush1.msra.mxu0 0.0
  %540 = vmatprep.subr.mxu0 0.0
  %541 = vmatpush1.msra.mxu0 0.0
  %542 = vmatprep.subr.mxu0 0.0
  %543 = vmatpush1.msra.mxu0 0.0
  %544 = vmatprep.subr.mxu0 0.0
  %545 = vmatpush1.msra.mxu0 0.0
  %546 = vmatprep.subr.mxu0 %v518
  %547 = vmatpush1.msra.mxu0 %v517
  %548 = vmatprep.subr.mxu0 %v516
  %549 = vmatpush1.msra.mxu0 %v515
  %550 = vmatprep.subr.mxu0 %v514
  %551 = vmatpush1.msra.mxu0 %v513
  %552 = vmatprep.subr.mxu0 %v512
  %553 = vmatpush1.msra.mxu0 %v511
  %554 = vmatprep.subr.mxu0 %v510
  %555 = vmatpush1.msra.mxu0 %v509
  %556 = vmatprep.subr.mxu0 %v508
  %557 = vmatpush1.msra.mxu0 %v507
  %558 = vmatprep.subr.mxu0 %v506
  %559 = vmatpush1.msra.mxu0 %v505
  %560 = vmatprep.subr.mxu0 %v504
  %561 = vmatpush1.msra.mxu0 %v503
  %562 = vmatprep.subr.mxu0 0.0
  %563 = vmatpush2.msra.mxu0 0.0
  %564 = vmatprep.subr.mxu0 0.0
  %565 = vmatpush2.msra.mxu0 0.0
  %566 = vmatprep.subr.mxu0 0.0
  %567 = vmatpush2.msra.mxu0 0.0
  %568 = vmatprep.subr.mxu0 0.0
  %569 = vmatpush2.msra.mxu0 0.0
  %570 = vmatprep.subr.mxu0 0.0
  %571 = vmatpush2.msra.mxu0 0.0
  %572 = vmatprep.subr.mxu0 0.0
  %573 = vmatpush2.msra.mxu0 0.0
  %574 = vmatprep.subr.mxu0 0.0
  %575 = vmatpush2.msra.mxu0 0.0
  %576 = vmatprep.subr.mxu0 0.0
  %577 = vmatpush2.msra.mxu0 0.0
  %578 = vmatprep.subr.mxu0 0.0
  %579 = vmatpush2.msra.mxu0 0.0
  %580 = vmatprep.subr.mxu0 0.0
  %581 = vmatpush2.msra.mxu0 0.0
  %582 = vmatprep.subr.mxu0 0.0
  %583 = vmatpush2.msra.mxu0 0.0
  %584 = vmatprep.subr.mxu0 0.0
  %585 = vmatpush2.msra.mxu0 0.0
  %586 = vmatprep.subr.mxu0 0.0
  %587 = vmatpush2.msra.mxu0 0.0
  %588 = vmatprep.subr.mxu0 0.0
  %589 = vmatpush2.msra.mxu0 0.0
  %590 = vmatprep.subr.mxu0 0.0
  %591 = vmatpush2.msra.mxu0 0.0
  %592 = vmatprep.subr.mxu0 0.0
  %593 = vmatpush2.msra.mxu0 0.0
  %594 = vmatprep.mubr.f32.mxu0 0.0
  %595 = vmatmul.mubr.f32.gmra.mxu0 %v528
  %v596 = vpop.f32.mrf.mxu0
  %v597 = vadd.f32 %v524, %v596
  %v598 = vpop.f32.mrf.mxu0
  %v599 = vadd.f32 %v524, %v598
  %600 = vdwg.mxu0
  %v603 = vcombine.low %v597, %v599
  %v605 = vunpack.c.l.s4 1983009808
  %v606 = vunpack.c.0.s8 %v605
  %v607 = vlaneseq
  %v608 = vshrl.u32 %v607, 7
  %v609 = vsub.s32 %v606, %v608
  %v610 = vrot.slane %v603, %v609
  %612 = vst [vmem:[%s9] sm:$0xf] %v610
  // Predicated region
  $region38: #{mtl_forward_pallas.1} parent=0 // pred_check
    _
  $region39: #{mtl_forward_pallas.1} parent=0 // pred_check_branch
    %614 = sbr.rel (0) target = $region41
  $region40: #{mtl_forward_pallas.1} parent=0 // pred_region
    _
  $region41: #{mtl_forward_pallas.1} parent=0 // pred_fallthru
    _
  // Predicated region
  $region42: #{mtl_forward_pallas.1} parent=0 // pred_check
    _
  $region43: #{mtl_forward_pallas.1} parent=0 // pred_check_branch
    %616 = sbr.rel (0) target = $region45
  $region44: #{mtl_forward_pallas.1} parent=0 // pred_region
    _
  $region45: #{mtl_forward_pallas.1} parent=0 // pred_fallthru
    _

</llo_original>
